<compile_context>
chip_gen: v7x
topology: tpu7x:2x2x1
jax: 0.10.0
libtpu: 0.0.40
codegen_flags: <defaults>
</compile_context>

<pallas_src>
import functools
import math

import jax
import jax.numpy as jnp
from jax import lax
from jax.experimental import pallas as pl
from jax.experimental.pallas import tpu as pltpu

EPS = 1e-12


def _cdiv(a, b):
    return -(-a // b)


# ---------------------------------------------------------------------------
# In-kernel math
# ---------------------------------------------------------------------------
def _norm_scale(parts, norm_type, eps, approx):
    """parts: list of (bn, H) f32 lane slices of one vector group.
    Returns `scale` such that out_c = part_c * scale.
    scale is (bn, H) for max_min, (bn, 1) for rms."""
    sq = parts[0] * parts[0]
    for p in parts[1:]:
        sq = sq + p * p                                # VPU adds, stays on lanes
    dist = jnp.maximum(jnp.sqrt(sq), eps)              # (bn, H), clamp(min=eps)

    if norm_type == "max_min":
        inv_dist = pl.reciprocal(dist, approx=approx)            # EUP
        max_val = jnp.max(dist, axis=-1, keepdims=True)          # (bn, 1)
        min_val = jnp.min(dist, axis=-1, keepdims=True)          # (bn, 1)
        delta = max_val - min_val
        delta = jnp.where(delta == 0.0, 1.0, delta)
        d = jnp.maximum((dist - min_val) * pl.reciprocal(delta, approx=approx), 0.0)
        return d * inv_dist                                      # (bn, H)

    # rms: scale = 1/sqrt(mean(dist^2));  F.relu is a no-op since dist >= eps > 0
    r2 = jnp.mean(dist * dist, axis=-1, keepdims=True)           # (bn, 1)
    return lax.rsqrt(r2)                                         # EUP


def vec_layer_norm_kernel(x_ref, w_ref, o_ref, *, channels, hidden, fold,
                          norm_type, eps, approx):
    x = x_ref[...]          # (bn, fold*C*H), native dtype — no full-tile upcast
    w = w_ref[...]          # (1,  fold*C*H), f32 (weight pre-tiled per channel)

    if norm_type == "none":
        o_ref[...] = (x.astype(jnp.float32) * w).astype(o_ref.dtype)
        return

    ch = channels * hidden
    groups = ((0, channels),) if channels == 3 else ((0, 3), (3, channels))

    pieces = []
    for j in range(fold):                 # folded sub-rows = independent batch rows
        base = j * ch
        for c0, c1 in groups:
            parts = [
                x[:, base + c * hidden: base + (c + 1) * hidden].astype(jnp.float32)
                for c in range(c0, c1)
            ]
            scale = _norm_scale(parts, norm_type, eps, approx)
            for p in parts:
                pieces.append(p * scale)

    # Assemble the whole tile in registers, apply the weight once, and do a
    # SINGLE full-width (lane-dense) store.
    y = jnp.concatenate(pieces, axis=-1) * w
    o_ref[...] = y.astype(o_ref.dtype)


# ---------------------------------------------------------------------------
# Wrapper helpers
# ---------------------------------------------------------------------------
def _vmem_capacity_bytes():
    try:
        return int(pltpu.get_tpu_info().vmem_capacity_bytes)
    except Exception:
        return 64 << 20          # conservative (v7x-sized) default


def _fold_factor(n_rows, ch):
    """Fold k batch rows per kernel row so the lane width is a multiple of 128
    (unmasked vld/vst).  Only applied when k divides N (free reshape)."""
    if ch % 128 == 0:
        return 1
    k = 128 // math.gcd(ch, 128)
    return k if (k <= n_rows and n_rows % k == 0) else 1


def _pick_block_n(n_rows, width, itemsize, target_bytes):
    """Batch tile: ~target_bytes per input tile, multiple of 8 rows, and an even
    number of grid steps when small so the batch axis splits evenly across the
    two v7x TensorCores."""
    if n_rows <= 16:
        return n_rows                                  # single full-extent block
    bn = max(8, min(4096, target_bytes // max(1, width * itemsize)))
    bn -= bn % 8
    steps = _cdiv(n_rows, bn)
    if steps == 1:
        steps = 2                      # allow a 2-TC split even for "one tile" sizes
    elif steps % 2 and steps < 64:
        steps += 1                     # even step count -> balanced megacore split
    bn = ((_cdiv(n_rows, steps) + 7) // 8) * 8
    return min(max(bn, 8), n_rows)


# ---------------------------------------------------------------------------
# Wrapper
# ---------------------------------------------------------------------------
def vec_layer_norm(vec, weight, norm_type="max_min", eps=EPS, block_n=None,
                   approx=True):
    N, C, H = vec.shape
    if C not in (3, 8):
        raise ValueError("VecLayerNorm only support 3 or 8 channels")
    assert weight.shape == (H,)

    CH = C * H
    fold = _fold_factor(N, CH)
    Nf, W = N // fold, fold * CH

    x2 = vec.reshape(Nf, W)                                        # contiguous, free
    w2 = jnp.tile(weight.astype(jnp.float32), C * fold).reshape(1, W)

    vmem_cap = _vmem_capacity_bytes()
    target = (4 << 20) if vmem_cap >= (100 << 20) else (2 << 20)   # v5e/v6e vs v7x
    bn = block_n if block_n is not None else _pick_block_n(Nf, W, vec.dtype.itemsize,
                                                           target)
    bn = min(bn, Nf)
    grid = (_cdiv(Nf, bn),)   # ragged last block: garbage rows read (math is strictly
                              # row-local), OOB writes dropped — no pad / slice copies.

    # Right-size the scoped VMEM limit to the actual working set:
    # double-buffered in + out tiles plus ~3 f32 temporaries plus headroom.
    tile_native = bn * W * vec.dtype.itemsize
    tile_f32 = bn * W * 4
    vmem_limit = 4 * tile_native + 3 * tile_f32 + (8 << 20)
    vmem_limit = int(min(max(vmem_limit, 16 << 20), vmem_cap - (8 << 20), 56 << 20))

    kernel = functools.partial(
        vec_layer_norm_kernel, channels=C, hidden=H, fold=fold,
        norm_type=norm_type, eps=eps, approx=approx,
    )

    cost = pl.CostEstimate(
        flops=int(12 * N * CH),
        transcendentals=int(6 * N * H),
        bytes_accessed=int(2 * N * CH * vec.dtype.itemsize + W * 4),
    )

    out = pl.pallas_call(
        kernel,
        out_shape=jax.ShapeDtypeStruct((Nf, W), vec.dtype),
        grid_spec=pltpu.PrefetchScalarGridSpec(
            num_scalar_prefetch=0,
            grid=grid,
            in_specs=[
                pl.BlockSpec((bn, W), lambda i: (i, 0)),
                pl.BlockSpec((1, W), lambda i: (0, 0)),
            ],
            out_specs=pl.BlockSpec((bn, W), lambda i: (i, 0)),
        ),
        compiler_params=pltpu.CompilerParams(
            dimension_semantics=("parallel",),
            vmem_limit_bytes=vmem_limit,
        ),
        cost_estimate=cost,
    )(x2, w2)

    return out.reshape(N, C, H)


# ---------------------------------------------------------------------------
# Pure-JAX reference (mirrors the PyTorch forward) for a correctness check
# ---------------------------------------------------------------------------
def vec_layer_norm_ref(vec, weight, norm_type="max_min", eps=EPS):
    def norm(v):
        if norm_type == "none":
            return v
        dist = jnp.sqrt(jnp.sum(v * v, axis=1, keepdims=True))
        dist = jnp.maximum(dist, eps)
        if norm_type == "rms":
            d = jnp.sqrt(jnp.mean(dist[:, 0, :] ** 2, axis=-1))
            return v / jnp.maximum(d, 0.0)[:, None, None]
        direct = v / dist
        max_val = jnp.max(dist, axis=-1, keepdims=True)
        min_val = jnp.min(dist, axis=-1, keepdims=True)
        delta = max_val - min_val
        delta = jnp.where(delta == 0.0, 1.0, delta)
        d = (dist - min_val) / delta
        return jnp.maximum(d, 0.0) * direct

    C = vec.shape[1]
    if C == 3:
        y = norm(vec)
    else:
        y = jnp.concatenate([norm(vec[:, :3]), norm(vec[:, 3:])], axis=1)
    return y * weight[None, None, :]


if __name__ == "__main__":
    key = jax.random.PRNGKey(0)
    k1, k2, k3, k4 = jax.random.split(key, 4)

    # Tolerances are loosened to 5e-3 because the kernel routes reciprocals /
    # rsqrt through the approximate EUP path (pass approx=False for exactness).
    TOL = 5e-3

    # Case 1: module defaults — C=8 ([3,5] split), hidden=32, weight=ones, max_min.
    N1, C1, H1 = 2, 8, 32
    x1 = jax.random.normal(k1, (N1, C1, H1), dtype=jnp.float32)
    w1 = jnp.ones((H1,), dtype=jnp.float32)          # reset_parameters(): ones
    out1 = jax.block_until_ready(vec_layer_norm(x1, w1, norm_type="max_min"))
    ref1 = vec_layer_norm_ref(x1, w1, norm_type="max_min")
    assert out1.shape == (N1, C1, H1)
    assert jnp.allclose(out1, ref1, atol=TOL, rtol=TOL), "max_min mismatch"

    # Case 2: C=3, rms norm. CH=96 -> fold=4 rows per kernel row (lane width 384).
    N2, C2, H2 = 20, 3, 32
    x2 = jax.random.normal(k2, (N2, C2, H2), dtype=jnp.float32)
    w2 = jax.random.normal(k3, (H2,), dtype=jnp.float32)
    out2 = jax.block_until_ready(vec_layer_norm(x2, w2, norm_type="rms"))
    ref2 = vec_layer_norm_ref(x2, w2, norm_type="rms")
    assert out2.shape == (N2, C2, H2)
    assert jnp.allclose(out2, ref2, atol=TOL, rtol=TOL), "rms mismatch"

    # Case 3: multi-step grid with a ragged last block (row-local math -> safe).
    N3, C3, H3 = 1000, 8, 32
    x3 = jax.random.normal(k4, (N3, C3, H3), dtype=jnp.float32)
    w3 = jnp.ones((H3,), dtype=jnp.float32)
    out3 = jax.block_until_ready(vec_layer_norm(x3, w3, norm_type="max_min"))
    ref3 = vec_layer_norm_ref(x3, w3, norm_type="max_min")
    assert jnp.allclose(out3, ref3, atol=TOL, rtol=TOL), "ragged max_min mismatch"

    # Case 4: 'none' norm path (vec * weight) is exact.
    out4 = jax.block_until_ready(vec_layer_norm(x1, w1, norm_type="none"))
    ref4 = vec_layer_norm_ref(x1, w1, norm_type="none")
    assert jnp.allclose(out4, ref4, atol=1e-6, rtol=1e-6), "none mismatch"

    print("KERNEL_OK")
</pallas_src>

<mosaic_0001>
module attributes {stable_mosaic.version = 11 : i64} {
  func.func @vec_layer_norm_kernel(%arg0: i32, %arg1: memref<2x256xf32, #tpu.memory_space<vmem>>, %arg2: memref<1x256xf32, #tpu.memory_space<vmem>>, %arg3: memref<2x256xf32, #tpu.memory_space<vmem>>) attributes {dimension_semantics = [#tpu.dimension_semantics<parallel>], iteration_bounds = array<i64: 1>, scalar_prefetch = 0 : i64, scratch_operands = 0 : i64, tpu.core_type = #tpu.core_type<tc>, window_params = [{transform_indices = @transform_0, window_bounds = array<i64: 2, 256>}, {pipeline_mode = #tpu.pipeline_mode<synchronous>, transform_indices = @transform_1, window_bounds = array<i64: 1, 256>}, {transform_indices = @transform_2, window_bounds = array<i64: 2, 256>}]} {
    %c0 = arith.constant 0 : index
    %c0_0 = arith.constant 0 : index
    %0 = vector.load %arg1[%c0, %c0_0] : memref<2x256xf32, #tpu.memory_space<vmem>>, vector<2x256xf32>
    %c0_1 = arith.constant 0 : index
    %c0_2 = arith.constant 0 : index
    %1 = vector.load %arg2[%c0_1, %c0_2] : memref<1x256xf32, #tpu.memory_space<vmem>>, vector<1x256xf32>
    %2 = vector.extract_strided_slice %0 {offsets = [0, 0], sizes = [2, 32], strides = [1, 1]} : vector<2x256xf32> to vector<2x32xf32>
    %3 = vector.extract_strided_slice %0 {offsets = [0, 32], sizes = [2, 32], strides = [1, 1]} : vector<2x256xf32> to vector<2x32xf32>
    %4 = vector.extract_strided_slice %0 {offsets = [0, 64], sizes = [2, 32], strides = [1, 1]} : vector<2x256xf32> to vector<2x32xf32>
    %5 = arith.mulf %2, %2 : vector<2x32xf32>
    %6 = arith.mulf %3, %3 : vector<2x32xf32>
    %7 = arith.addf %5, %6 : vector<2x32xf32>
    %8 = arith.mulf %4, %4 : vector<2x32xf32>
    %9 = arith.addf %7, %8 : vector<2x32xf32>
    %10 = math.sqrt %9 : vector<2x32xf32>
    %cst = arith.constant 9.99999996E-13 : f32
    %11 = vector.broadcast %cst : f32 to vector<2x32xf32>
    %12 = arith.maximumf %10, %11 : vector<2x32xf32>
    %13 = tpu.reciprocal %12 {approx = true} : vector<2x32xf32> -> vector<2x32xf32>
    %cst_3 = arith.constant dense<0xFF800000> : vector<2xf32>
    %14 = vector.multi_reduction <maximumf>, %12, %cst_3 [1] : vector<2x32xf32> to vector<2xf32>
    %15 = vector.shape_cast %14 : vector<2xf32> to vector<2x1xf32>
    %cst_4 = arith.constant dense<0x7F800000> : vector<2xf32>
    %16 = vector.multi_reduction <minimumf>, %12, %cst_4 [1] : vector<2x32xf32> to vector<2xf32>
    %17 = vector.shape_cast %16 : vector<2xf32> to vector<2x1xf32>
    %18 = arith.subf %15, %17 : vector<2x1xf32>
    %cst_5 = arith.constant 0.000000e+00 : f32
    %19 = vector.broadcast %cst_5 : f32 to vector<2x1xf32>
    %20 = arith.cmpf oeq, %18, %19 : vector<2x1xf32>
    %cst_6 = arith.constant 1.000000e+00 : f32
    %21 = vector.broadcast %cst_6 : f32 to vector<2x1xf32>
    %22 = arith.select %20, %21, %18 : vector<2x1xi1>, vector<2x1xf32>
    %23 = vector.broadcast %17 : vector<2x1xf32> to vector<2x32xf32>
    %24 = arith.subf %12, %23 : vector<2x32xf32>
    %25 = tpu.reciprocal %22 {approx = true} : vector<2x1xf32> -> vector<2x1xf32>
    %26 = vector.broadcast %25 : vector<2x1xf32> to vector<2x32xf32>
    %27 = arith.mulf %24, %26 : vector<2x32xf32>
    %cst_7 = arith.constant 0.000000e+00 : f32
    %28 = vector.broadcast %cst_7 : f32 to vector<2x32xf32>
    %29 = arith.maximumf %27, %28 : vector<2x32xf32>
    %30 = arith.mulf %29, %13 : vector<2x32xf32>
    %31 = arith.mulf %2, %30 : vector<2x32xf32>
    %32 = arith.mulf %3, %30 : vector<2x32xf32>
    %33 = arith.mulf %4, %30 : vector<2x32xf32>
    %34 = vector.extract_strided_slice %0 {offsets = [0, 96], sizes = [2, 32], strides = [1, 1]} : vector<2x256xf32> to vector<2x32xf32>
    %35 = vector.extract_strided_slice %0 {offsets = [0, 128], sizes = [2, 32], strides = [1, 1]} : vector<2x256xf32> to vector<2x32xf32>
    %36 = vector.extract_strided_slice %0 {offsets = [0, 160], sizes = [2, 32], strides = [1, 1]} : vector<2x256xf32> to vector<2x32xf32>
    %37 = vector.extract_strided_slice %0 {offsets = [0, 192], sizes = [2, 32], strides = [1, 1]} : vector<2x256xf32> to vector<2x32xf32>
    %38 = vector.extract_strided_slice %0 {offsets = [0, 224], sizes = [2, 32], strides = [1, 1]} : vector<2x256xf32> to vector<2x32xf32>
    %39 = arith.mulf %34, %34 : vector<2x32xf32>
    %40 = arith.mulf %35, %35 : vector<2x32xf32>
    %41 = arith.addf %39, %40 : vector<2x32xf32>
    %42 = arith.mulf %36, %36 : vector<2x32xf32>
    %43 = arith.addf %41, %42 : vector<2x32xf32>
    %44 = arith.mulf %37, %37 : vector<2x32xf32>
    %45 = arith.addf %43, %44 : vector<2x32xf32>
    %46 = arith.mulf %38, %38 : vector<2x32xf32>
    %47 = arith.addf %45, %46 : vector<2x32xf32>
    %48 = math.sqrt %47 : vector<2x32xf32>
    %cst_8 = arith.constant 9.99999996E-13 : f32
    %49 = vector.broadcast %cst_8 : f32 to vector<2x32xf32>
    %50 = arith.maximumf %48, %49 : vector<2x32xf32>
    %51 = tpu.reciprocal %50 {approx = true} : vector<2x32xf32> -> vector<2x32xf32>
    %cst_9 = arith.constant dense<0xFF800000> : vector<2xf32>
    %52 = vector.multi_reduction <maximumf>, %50, %cst_9 [1] : vector<2x32xf32> to vector<2xf32>
    %53 = vector.shape_cast %52 : vector<2xf32> to vector<2x1xf32>
    %cst_10 = arith.constant dense<0x7F800000> : vector<2xf32>
    %54 = vector.multi_reduction <minimumf>, %50, %cst_10 [1] : vector<2x32xf32> to vector<2xf32>
    %55 = vector.shape_cast %54 : vector<2xf32> to vector<2x1xf32>
    %56 = arith.subf %53, %55 : vector<2x1xf32>
    %cst_11 = arith.constant 0.000000e+00 : f32
    %57 = vector.broadcast %cst_11 : f32 to vector<2x1xf32>
    %58 = arith.cmpf oeq, %56, %57 : vector<2x1xf32>
    %cst_12 = arith.constant 1.000000e+00 : f32
    %59 = vector.broadcast %cst_12 : f32 to vector<2x1xf32>
    %60 = arith.select %58, %59, %56 : vector<2x1xi1>, vector<2x1xf32>
    %61 = vector.broadcast %55 : vector<2x1xf32> to vector<2x32xf32>
    %62 = arith.subf %50, %61 : vector<2x32xf32>
    %63 = tpu.reciprocal %60 {approx = true} : vector<2x1xf32> -> vector<2x1xf32>
    %64 = vector.broadcast %63 : vector<2x1xf32> to vector<2x32xf32>
    %65 = arith.mulf %62, %64 : vector<2x32xf32>
    %cst_13 = arith.constant 0.000000e+00 : f32
    %66 = vector.broadcast %cst_13 : f32 to vector<2x32xf32>
    %67 = arith.maximumf %65, %66 : vector<2x32xf32>
    %68 = arith.mulf %67, %51 : vector<2x32xf32>
    %69 = arith.mulf %34, %68 : vector<2x32xf32>
    %70 = arith.mulf %35, %68 : vector<2x32xf32>
    %71 = arith.mulf %36, %68 : vector<2x32xf32>
    %72 = arith.mulf %37, %68 : vector<2x32xf32>
    %73 = arith.mulf %38, %68 : vector<2x32xf32>
    %74 = tpu.concatenate %31, %32, %33, %69, %70, %71, %72, %73 in 1 : vector<2x32xf32>, vector<2x32xf32>, vector<2x32xf32>, vector<2x32xf32>, vector<2x32xf32>, vector<2x32xf32>, vector<2x32xf32>, vector<2x32xf32> -> vector<2x256xf32>
    %75 = vector.broadcast %1 : vector<1x256xf32> to vector<2x256xf32>
    %76 = arith.mulf %74, %75 : vector<2x256xf32>
    %c0_14 = arith.constant 0 : index
    %c0_15 = arith.constant 0 : index
    %77 = vector.load %arg3[%c0_14, %c0_15] : memref<2x256xf32, #tpu.memory_space<vmem>>, vector<2x256xf32>
    tpu.vector_store %arg3[%c0_14, %c0_15], %76 {strides = array<i32>} : memref<2x256xf32, #tpu.memory_space<vmem>>, vector<2x256xf32>,
    return
  }
  func.func @transform_0(%arg0: i32) -> (i32, i32) {
    %c0_i32 = arith.constant 0 : i32
    %c0_i32_0 = arith.constant 0 : i32
    return %arg0, %c0_i32 : i32, i32
  }
  func.func @transform_1(%arg0: i32) -> (i32, i32) {
    %c0_i32 = arith.constant 0 : i32
    %c0_i32_0 = arith.constant 0 : i32
    %c0_i32_1 = arith.constant 0 : i32
    return %c0_i32, %c0_i32_0 : i32, i32
  }
  func.func @transform_2(%arg0: i32) -> (i32, i32) {
    %c0_i32 = arith.constant 0 : i32
    %c0_i32_0 = arith.constant 0 : i32
    return %arg0, %c0_i32 : i32, i32
  }
}

</mosaic_0001>

<llo_original>
// kernel: tpu_custom_call.1
$region0: #{tpu_custom_call.1}
  #allocation0 [shape = 'u32[]', space=smem, size = 0x4, offset = 0x4, fixed_abs, tag = 'smem constant byte address 0x4 - core index']
  #allocation1 [shape = 'u32[144,128]{1,0:T(1,128)}', space=vmem, size = 0x12000, scoped, tag = 'internal scratch']
  %s0 = inlined_call_operand.hbm [shape: f32[2,256], index: 0, kind: input, shape index: {}]
  %s1 = inlined_call_operand.vmem [shape: f32[1,256], index: 1, kind: input, shape index: {}]
  %s2 = inlined_call_operand.hbm [shape: f32[2,256], index: 2, kind: output, shape index: {}]
  %s3 = sld [smem:[#allocation0]]
  $region22: #{tpu_custom_call.1} parent=0
    _
  %s5 = ssub.s32 1, %s3
  %s6 = scalar_select 0, %s5, %s3
  $region1: #{tpu_custom_call.1} parent=0
    #allocation2 [shape = 'u8[2048]{0}', space=vmem, size = 0x800, scoped, tag = 'input window, operand 0, single buffered']
    #allocation3 [shape = 's32[1]{0}', space=sflag, size = 0x4, scoped, tag = 'scoped memory for tpu_custom_call.1']
    #allocation4 [shape = 's32[1]{0}', space=sflag, size = 0x4, scoped, tag = 'scoped memory for tpu_custom_call.1']
    #allocation5 [shape = 'u8[2048]{0}', space=vmem, size = 0x800, scoped, tag = 'output window, operand 0, single buffered']
    %7 = vsyncpa [#allocation3], 0
    %8 = vsyncpa [#allocation4], 0
    // Predicated region
    $region2: #{tpu_custom_call.1} parent=1 // pred_check
      _
    $region3: #{tpu_custom_call.1} parent=1 // pred_check_branch
      %10 = sbr.rel (0) target = $region5
    $region4: #{tpu_custom_call.1} parent=1 // pred_region
      %s12 = ssub.s32 64, 64
      %13 = vsyncadd [#allocation3], %s12
      %s15 = sshll.u32 [#allocation2], 4
      %s16 = int_to_ptr.vmem [resolvable:$true] %s15
      %18 = dma.hbm_to_vmem [thread:$0]  %s0, 64, %s16, [#allocation3]
    $region5: #{tpu_custom_call.1} parent=1 // pred_fallthru
      _
    // Predicated region
    $region6: #{tpu_custom_call.1} parent=1 // pred_check
      _
    $region7: #{tpu_custom_call.1} parent=1 // pred_check_branch
      %20 = sbr.rel (0) target = $region9
    $region8: #{tpu_custom_call.1} parent=1 // pred_region
      _
    $region9: #{tpu_custom_call.1} parent=1 // pred_fallthru
      _
    // Predicated region
    $region10: #{tpu_custom_call.1} parent=1 // pred_check
      _
    $region11: #{tpu_custom_call.1} parent=1 // pred_check_branch
      %22 = sbr.rel (0) target = $region13
    $region12: #{tpu_custom_call.1} parent=1 // pred_region
      %23 = dma.done [#allocation3], 64
    $region13: #{tpu_custom_call.1} parent=1 // pred_fallthru
      _
    %v24 = vld [vmem:[#allocation2] sm:$0xf]
    %v25 = vld [vmem:[%s1] sm:$0x3]
    %v26 = vmul.f32 %v24, %v24
    %28 = vrot.lane.b32.xlu0 %v26, 96
    %v29 = vpop.permute.xlu0 %28
    %v31 = vadd.f32 %v26, %v29
    %32 = vrot.lane.b32.xlu0 %v26, 64
    %v33 = vpop.permute.xlu0 %32
    %v35 = vadd.f32 %v31, %v33
    %v36 = vrsqrt.pop %v35
    %v37 = vmul.f32 %v35, %v36
    %vm38 = vcmp.eq.f32.partialorder %v35, inf
    %v39 = vsel %vm38, %v35, %v37
    %vm40 = vcmp.eq.f32.partialorder %v35, 0.0
    %v41 = vand.u32 %v35, 2147483648
    %v42 = vsel %vm40, %v41, %v39
    %v43 = vmax.f32 %v42, 1e-12
    %v44 = vrcp.pop %v43
    %vm45 = vcmask 254976
    %v46 = vsel %vm45, %v43, -inf
    %47 = vmax.xlane.f32.xlu0 %v46
    %v48 = vpop.xlane.xlu0 %47
    %v49 = vsel %vm45, %v43, inf
    %50 = vmin.xlane.f32.xlu0 %v49
    %v51 = vpop.xlane.xlu0 %50
    %v52 = vsub.f32 %v48, %v51
    %vm53 = vcmp.eq.f32.partialorder %v52, 0.0
    %v54 = vsel %vm53, 1.0, %v52
    %v55 = vsub.f32 %v43, %v51
    %v56 = vrcp.pop %v54
    %v57 = vmul.f32 %v55, %v56
    %v58 = vmax.f32 %v57, 0.0
    %v59 = vmul.f32 %v58, %v44
    %v60 = vmul.f32 %v24, %v59
    %62 = vrot.lane.b32.xlu0 %v59, 32
    %v63 = vpop.permute.xlu0 %62
    %v65 = vmul.f32 %v24, %v63
    %66 = vrot.lane.b32.xlu0 %v59, 64
    %v67 = vpop.permute.xlu0 %66
    %v69 = vmul.f32 %v24, %v67
    %v71 = vrot.slane %v24, 2
    %v73 = vmul.f32 %v71, %v71
    %75 = vrot.lane.b32.xlu0 %v73, 96
    %v76 = vpop.permute.xlu0 %75
    %v78 = vadd.f32 %v26, %v76
    %79 = vrot.lane.b32.xlu0 %v24, 96
    %v80 = vpop.permute.xlu0 %79
    %v81 = vrot.slane %v80, 2
    %v83 = vmul.f32 %v81, %v81
    %85 = vrot.lane.b32.xlu0 %v83, 96
    %v86 = vpop.permute.xlu0 %85
    %v88 = vadd.f32 %v78, %v86
    %89 = vrot.lane.b32.xlu0 %v24, 64
    %v90 = vpop.permute.xlu0 %89
    %v91 = vrot.slane %v90, 2
    %v93 = vmul.f32 %v91, %v91
    %95 = vrot.lane.b32.xlu0 %v93, 96
    %v96 = vpop.permute.xlu0 %95
    %v98 = vadd.f32 %v88, %v96
    %99 = vrot.lane.b32.xlu0 %v24, 32
    %v100 = vpop.permute.xlu0 %99
    %v101 = vrot.slane %v100, 2
    %v103 = vmul.f32 %v101, %v101
    %105 = vrot.lane.b32.xlu0 %v103, 96
    %v106 = vpop.permute.xlu0 %105
    %v108 = vadd.f32 %v98, %v106
    %v109 = vrsqrt.pop %v108
    %v110 = vmul.f32 %v108, %v109
    %vm111 = vcmp.eq.f32.partialorder %v108, inf
    %v112 = vsel %vm111, %v108, %v110
    %vm113 = vcmp.eq.f32.partialorder %v108, 0.0
    %v114 = vand.u32 %v108, 2147483648
    %v115 = vsel %vm113, %v114, %v112
    %v116 = vmax.f32 %v115, 1e-12
    %v117 = vrcp.pop %v116
    %vm118 = vcmask 1042176
    %v119 = vsel %vm118, %v116, -inf
    %120 = vmax.xlane.f32.xlu0 %v119
    %v121 = vpop.xlane.xlu0 %120
    %v122 = vsel %vm118, %v116, inf
    %123 = vmin.xlane.f32.xlu0 %v122
    %v124 = vpop.xlane.xlu0 %123
    %v125 = vsub.f32 %v121, %v124
    %vm126 = vcmp.eq.f32.partialorder %v125, 0.0
    %v127 = vsel %vm126, 1.0, %v125
    %v128 = vsub.f32 %v116, %v124
    %v129 = vrcp.pop %v127
    %v130 = vmul.f32 %v128, %v129
    %v131 = vmax.f32 %v130, 0.0
    %v132 = vmul.f32 %v131, %v117
    %v133 = vmul.f32 %v24, %v132
    %135 = vrot.lane.b32.xlu0 %v132, 32
    %v136 = vpop.permute.xlu0 %135
    %v138 = vmul.f32 %v71, %v136
    %v139 = vmul.f32 %v81, %v136
    %v140 = vmul.f32 %v91, %v136
    %v141 = vmul.f32 %v101, %v136
    %v144 = vunpack.c.l.s4 1983009808
    %v145 = vunpack.c.0.s8 %v144
    %v146 = vlaneseq
    %v147 = vshrl.u32 %v146, 7
    %v148 = vsub.s32 %v145, %v147
    %v149 = vrot.slane %v139, %v148
    %150 = vrot.lane.b32.xlu0 %v149, 32
    %v151 = vpop.permute.xlu0 %150
    %v155 = vunpack.c.l.s4 1983009808
    %v156 = vunpack.c.0.s8 %v155
    %v157 = vlaneseq
    %v158 = vshrl.u32 %v157, 7
    %v159 = vsub.s32 %v156, %v158
    %v160 = vrot.slane %v140, %v159
    %161 = vrot.lane.b32.xlu0 %v160, 64
    %v162 = vpop.permute.xlu0 %161
    %v166 = vunpack.c.l.s4 1983009808
    %v167 = vunpack.c.0.s8 %v166
    %v168 = vlaneseq
    %v169 = vshrl.u32 %v168, 7
    %v170 = vsub.s32 %v167, %v169
    %v171 = vrot.slane %v141, %v170
    %172 = vrot.lane.b32.xlu0 %v171, 96
    %v173 = vpop.permute.xlu0 %172
    %vm175 = vcmask 261120
    %v176 = vsel %vm175, %v60, %v65
    %vm177 = vcmask 523264
    %v178 = vsel %vm177, %v176, %v69
    %vm179 = vcmask 785408
    %v180 = vsel %vm179, %v178, %v133
    %v181 = vsel %vm175, %v138, %v151
    %v182 = vsel %vm177, %v181, %v162
    %v183 = vsel %vm179, %v182, %v173
    %v185 = vlaneseq
    %v186 = vshrl.u32 %v185, 7
    %v187 = vsub.s32 0, %v186
    %v188 = vrot.slane %v25, %v187
    %v189 = vlaneseq
    %v190 = vshrl.u32 %v189, 7
    %v191 = vsub.s32 1, %v190
    %v192 = vrot.slane %v25, %v191
    %v195 = vmul.f32 %v180, %v188
    %v196 = vmul.f32 %v183, %v192
    %v199 = vcombine.low %v195, %v196
    %v201 = vunpack.c.l.s4 1983009808
    %v202 = vunpack.c.0.s8 %v201
    %v203 = vlaneseq
    %v204 = vshrl.u32 %v203, 7
    %v205 = vsub.s32 %v202, %v204
    %v206 = vrot.slane %v199, %v205
    %208 = vst [vmem:[#allocation5] sm:$0xf] %v206
    // Predicated region
    $region14: #{tpu_custom_call.1} parent=1 // pred_check
      _
    $region15: #{tpu_custom_call.1} parent=1 // pred_check_branch
      %210 = sbr.rel (0) target = $region17
    $region16: #{tpu_custom_call.1} parent=1 // pred_region
      %s212 = ssub.s32 64, 64
      %213 = vsyncadd [#allocation4], %s212
      %s215 = sshll.u32 [#allocation5], 4
      %s216 = int_to_ptr.vmem [resolvable:$true] %s215
      %218 = dma.vmem_to_hbm [thread:$0]  %s216, 64, %s2, [#allocation4]
    $region17: #{tpu_custom_call.1} parent=1 // pred_fallthru
      _
    // Predicated region
    $region18: #{tpu_custom_call.1} parent=1 // pred_check
      _
    $region19: #{tpu_custom_call.1} parent=1 // pred_check_branch
      %220 = sbr.rel (0) target = $region21
    $region20: #{tpu_custom_call.1} parent=1 // pred_region
      %221 = dma.done [#allocation4], 64
    $region21: #{tpu_custom_call.1} parent=1 // pred_fallthru
      _
    %222 = vsyncpa [#allocation3], 1
    %223 = vsyncpa [#allocation4], 1

</llo_original>
